<compile_context>
chip_gen: v5e
topology: v5e:2x2
jax: 0.10.0
libtpu: 0.0.40
codegen_flags: <defaults>
</compile_context>

<pallas_src>
import math

import jax
import jax.numpy as jnp
from jax.experimental import pallas as pl
from jax.experimental.pallas import tpu as pltpu

LANE = 128      # vreg lane width
SUBLANE = 8     # f32 sublane count


def _round_up(n, m):
    return (n + m - 1) // m * m


def _mlp_kernel(x_ref, w1_ref, b1_ref, w2_ref, b2_ref, w3_ref, b3_ref, o_ref):
    # x tile (BM, S) f32; weights/biases f32, resident across the batch grid.
    # Layer 1: Linear(S, Hp) + ReLU          -> (BM, Hp=128), padded cols stay 0
    h = jnp.dot(x_ref[...], w1_ref[...], preferred_element_type=jnp.float32)
    h = jnp.maximum(h + b1_ref[...], 0.0)
    # Layer 2: Linear(Hp, Hp) + ReLU         -> (BM, Hp)
    h = jnp.dot(h, w2_ref[...], preferred_element_type=jnp.float32)
    h = jnp.maximum(h + b2_ref[...], 0.0)
    # Layer 3: Linear(Hp, H) + ReLU          -> (BM, H=64): only real columns
    h = jnp.dot(h, w3_ref[...], preferred_element_type=jnp.float32)
    o_ref[...] = jnp.maximum(h + b3_ref[...], 0.0)


def prepare_params(params):
    """One-time prep: zero-pad the hidden width H -> 128 lanes for layers 1/2
    (lane-dense intermediate compute).  Layer 3 keeps its real H output
    columns so the kernel only writes real data to HBM.  Everything stays f32
    to match the PyTorch module."""
    S, H = params["w1"].shape
    Hp = _round_up(H, LANE)

    def pad2(a, rows, cols):
        return jnp.pad(a, ((0, rows - a.shape[0]), (0, cols - a.shape[1])))

    return {
        "w1": pad2(params["w1"], S, Hp).astype(jnp.float32),   # (S, Hp)
        "b1": pad2(params["b1"], 1, Hp).astype(jnp.float32),   # (1, Hp), pad = 0
        "w2": pad2(params["w2"], Hp, Hp).astype(jnp.float32),  # (Hp, Hp)
        "b2": pad2(params["b2"], 1, Hp).astype(jnp.float32),   # (1, Hp)
        "w3": pad2(params["w3"], Hp, H).astype(jnp.float32),   # (Hp, H): rows padded only
        "b3": params["b3"].astype(jnp.float32),                # (1, H)
    }


def continuous_policy_forward(x, p, block_m=4096):
    """Pallas implementation of ContinuousPolicy.forward (the MLP trunk).

    x: (B, S) f32.  p: prepare_params(...) output.  Returns (B, H) f32.
    """
    B, S = x.shape
    Hp = p["w1"].shape[1]
    H = p["w3"].shape[1]
    assert p["w1"].shape[0] == S

    # Balanced batch tiles: split B into n_steps near-equal tiles (multiple of
    # 8 sublanes) so a B slightly above block_m does not waste a whole tile.
    # Force >= 2 grid steps when there is enough work so the "parallel" batch
    # axis can use both TensorCores on v7x (no-op on v5e/v6e).
    n_steps = pl.cdiv(B, block_m)
    if n_steps < 2 and B > SUBLANE:
        n_steps = 2
    BM = _round_up(pl.cdiv(B, n_steps), SUBLANE)
    grid = (pl.cdiv(B, BM),)

    in_specs = [
        pl.BlockSpec((BM, S), lambda i: (i, 0)),     # x: streamed per batch tile
        pl.BlockSpec((S, Hp), lambda i: (0, 0)),     # w1: resident (constant map)
        pl.BlockSpec((1, Hp), lambda i: (0, 0)),     # b1
        pl.BlockSpec((Hp, Hp), lambda i: (0, 0)),    # w2
        pl.BlockSpec((1, Hp), lambda i: (0, 0)),     # b2
        pl.BlockSpec((Hp, H), lambda i: (0, 0)),     # w3 (real output columns)
        pl.BlockSpec((1, H), lambda i: (0, 0)),      # b3
    ]
    return pl.pallas_call(
        _mlp_kernel,
        out_shape=jax.ShapeDtypeStruct((B, H), jnp.float32),
        grid=grid,
        in_specs=in_specs,
        out_specs=pl.BlockSpec((BM, H), lambda i: (i, 0)),
        compiler_params=pltpu.CompilerParams(
            dimension_semantics=("parallel",),           # megacore on v7x
            vmem_limit_bytes=32 * 1024 * 1024,
        ),
    )(x, p["w1"], p["b1"], p["w2"], p["b2"], p["w3"], p["b3"])


def init_params(key, S, H):
    """Deterministic init mirroring nn.Linear's U(-1/sqrt(fan_in), 1/sqrt(fan_in))."""
    ks = jax.random.split(key, 6)

    def lin(kw, kb, fan_in, fan_out):
        bound = 1.0 / math.sqrt(fan_in)
        w = jax.random.uniform(kw, (fan_in, fan_out), jnp.float32, -bound, bound)
        b = jax.random.uniform(kb, (1, fan_out), jnp.float32, -bound, bound)
        return w, b

    w1, b1 = lin(ks[0], ks[1], S, H)
    w2, b2 = lin(ks[2], ks[3], H, H)
    w3, b3 = lin(ks[4], ks[5], H, H)
    return {"w1": w1, "b1": b1, "w2": w2, "b2": b2, "w3": w3, "b3": b3}


def _reference_forward(x, p):
    h = jnp.maximum(x @ p["w1"] + p["b1"], 0.0)
    h = jnp.maximum(h @ p["w2"] + p["b2"], 0.0)
    h = jnp.maximum(h @ p["w3"] + p["b3"], 0.0)
    return h


if __name__ == "__main__":
    # Small shapes consistent with the module: batch=8, S=16, hidden_size=64.
    B, S, H = 8, 16, 64
    key = jax.random.PRNGKey(0)
    k_param, k_x, k_x2 = jax.random.split(key, 3)
    params = init_params(k_param, S, H)
    prepped = prepare_params(params)

    x = jax.random.normal(k_x, (B, S), dtype=jnp.float32)
    out = jax.block_until_ready(continuous_policy_forward(x, prepped))
    assert out.shape == (B, H)
    ref = _reference_forward(x, params)
    assert jnp.allclose(out, ref, atol=2e-2, rtol=2e-2), float(jnp.max(jnp.abs(out - ref)))

    # Gridded / ragged path: B=1000 -> BM=504, grid=(2,), last block ragged by 8 rows.
    B2 = 1000
    x2 = jax.random.normal(k_x2, (B2, S), dtype=jnp.float32)
    out2 = jax.block_until_ready(continuous_policy_forward(x2, prepped))
    assert out2.shape == (B2, H)
    ref2 = _reference_forward(x2, params)
    assert jnp.allclose(out2, ref2, atol=2e-2, rtol=2e-2), float(jnp.max(jnp.abs(out2 - ref2)))

    print("KERNEL_OK")
</pallas_src>

<mosaic_0001>
module attributes {stable_mosaic.version = 11 : i64} {
  func.func @_mlp_kernel(%arg0: i32, %arg1: memref<8x16xf32, #tpu.memory_space<vmem>>, %arg2: memref<16x128xf32, #tpu.memory_space<vmem>>, %arg3: memref<1x128xf32, #tpu.memory_space<vmem>>, %arg4: memref<128x128xf32, #tpu.memory_space<vmem>>, %arg5: memref<1x128xf32, #tpu.memory_space<vmem>>, %arg6: memref<128x64xf32, #tpu.memory_space<vmem>>, %arg7: memref<1x64xf32, #tpu.memory_space<vmem>>, %arg8: memref<8x64xf32, #tpu.memory_space<vmem>>) attributes {dimension_semantics = [#tpu.dimension_semantics<parallel>], iteration_bounds = array<i64: 1>, scalar_prefetch = 0 : i64, scratch_operands = 0 : i64, tpu.core_type = #tpu.core_type<tc>, window_params = [{transform_indices = @transform_0, window_bounds = array<i64: 8, 16>}, {pipeline_mode = #tpu.pipeline_mode<synchronous>, transform_indices = @transform_1, window_bounds = array<i64: 16, 128>}, {pipeline_mode = #tpu.pipeline_mode<synchronous>, transform_indices = @transform_2, window_bounds = array<i64: 1, 128>}, {pipeline_mode = #tpu.pipeline_mode<synchronous>, transform_indices = @transform_3, window_bounds = array<i64: 128, 128>}, {pipeline_mode = #tpu.pipeline_mode<synchronous>, transform_indices = @transform_4, window_bounds = array<i64: 1, 128>}, {pipeline_mode = #tpu.pipeline_mode<synchronous>, transform_indices = @transform_5, window_bounds = array<i64: 128, 64>}, {pipeline_mode = #tpu.pipeline_mode<synchronous>, transform_indices = @transform_6, window_bounds = array<i64: 1, 64>}, {transform_indices = @transform_7, window_bounds = array<i64: 8, 64>}]} {
    %c0 = arith.constant 0 : index
    %c0_0 = arith.constant 0 : index
    %0 = vector.load %arg1[%c0, %c0_0] : memref<8x16xf32, #tpu.memory_space<vmem>>, vector<8x16xf32>
    %c0_1 = arith.constant 0 : index
    %c0_2 = arith.constant 0 : index
    %1 = vector.load %arg2[%c0_1, %c0_2] : memref<16x128xf32, #tpu.memory_space<vmem>>, vector<16x128xf32>
    %cst = arith.constant dense<0.000000e+00> : vector<8x128xf32>
    %2 = tpu.matmul %0, %1, %cst {dimension_numbers = #tpu.dot_dimension_numbers<[1], [0], [0], [1], [0, 0, 1, 1], [], []>} : vector<8x16xf32>, vector<16x128xf32>, vector<8x128xf32> -> vector<8x128xf32>
    %c0_3 = arith.constant 0 : index
    %c0_4 = arith.constant 0 : index
    %3 = vector.load %arg3[%c0_3, %c0_4] : memref<1x128xf32, #tpu.memory_space<vmem>>, vector<1x128xf32>
    %4 = vector.broadcast %3 : vector<1x128xf32> to vector<8x128xf32>
    %5 = arith.addf %2, %4 : vector<8x128xf32>
    %cst_5 = arith.constant 0.000000e+00 : f32
    %6 = vector.broadcast %cst_5 : f32 to vector<8x128xf32>
    %7 = arith.maximumf %5, %6 : vector<8x128xf32>
    %c0_6 = arith.constant 0 : index
    %c0_7 = arith.constant 0 : index
    %8 = vector.load %arg4[%c0_6, %c0_7] : memref<128x128xf32, #tpu.memory_space<vmem>>, vector<128x128xf32>
    %cst_8 = arith.constant dense<0.000000e+00> : vector<8x128xf32>
    %9 = tpu.matmul %7, %8, %cst_8 {dimension_numbers = #tpu.dot_dimension_numbers<[1], [0], [0], [1], [0, 0, 1, 1], [], []>} : vector<8x128xf32>, vector<128x128xf32>, vector<8x128xf32> -> vector<8x128xf32>
    %c0_9 = arith.constant 0 : index
    %c0_10 = arith.constant 0 : index
    %10 = vector.load %arg5[%c0_9, %c0_10] : memref<1x128xf32, #tpu.memory_space<vmem>>, vector<1x128xf32>
    %11 = vector.broadcast %10 : vector<1x128xf32> to vector<8x128xf32>
    %12 = arith.addf %9, %11 : vector<8x128xf32>
    %cst_11 = arith.constant 0.000000e+00 : f32
    %13 = vector.broadcast %cst_11 : f32 to vector<8x128xf32>
    %14 = arith.maximumf %12, %13 : vector<8x128xf32>
    %c0_12 = arith.constant 0 : index
    %c0_13 = arith.constant 0 : index
    %15 = vector.load %arg6[%c0_12, %c0_13] : memref<128x64xf32, #tpu.memory_space<vmem>>, vector<128x64xf32>
    %cst_14 = arith.constant dense<0.000000e+00> : vector<8x64xf32>
    %16 = tpu.matmul %14, %15, %cst_14 {dimension_numbers = #tpu.dot_dimension_numbers<[1], [0], [0], [1], [0, 0, 1, 1], [], []>} : vector<8x128xf32>, vector<128x64xf32>, vector<8x64xf32> -> vector<8x64xf32>
    %c0_15 = arith.constant 0 : index
    %c0_16 = arith.constant 0 : index
    %17 = vector.load %arg7[%c0_15, %c0_16] : memref<1x64xf32, #tpu.memory_space<vmem>>, vector<1x64xf32>
    %18 = vector.broadcast %17 : vector<1x64xf32> to vector<8x64xf32>
    %19 = arith.addf %16, %18 : vector<8x64xf32>
    %cst_17 = arith.constant 0.000000e+00 : f32
    %20 = vector.broadcast %cst_17 : f32 to vector<8x64xf32>
    %21 = arith.maximumf %19, %20 : vector<8x64xf32>
    %c0_18 = arith.constant 0 : index
    %c0_19 = arith.constant 0 : index
    %22 = vector.load %arg8[%c0_18, %c0_19] : memref<8x64xf32, #tpu.memory_space<vmem>>, vector<8x64xf32>
    tpu.vector_store %arg8[%c0_18, %c0_19], %21 {strides = array<i32>} : memref<8x64xf32, #tpu.memory_space<vmem>>, vector<8x64xf32>,
    return
  }
  func.func @transform_0(%arg0: i32) -> (i32, i32) {
    %c0_i32 = arith.constant 0 : i32
    %c0_i32_0 = arith.constant 0 : i32
    return %arg0, %c0_i32 : i32, i32
  }
  func.func @transform_1(%arg0: i32) -> (i32, i32) {
    %c0_i32 = arith.constant 0 : i32
    %c0_i32_0 = arith.constant 0 : i32
    %c0_i32_1 = arith.constant 0 : i32
    return %c0_i32, %c0_i32_0 : i32, i32
  }
  func.func @transform_2(%arg0: i32) -> (i32, i32) {
    %c0_i32 = arith.constant 0 : i32
    %c0_i32_0 = arith.constant 0 : i32
    %c0_i32_1 = arith.constant 0 : i32
    return %c0_i32, %c0_i32_0 : i32, i32
  }
  func.func @transform_3(%arg0: i32) -> (i32, i32) {
    %c0_i32 = arith.constant 0 : i32
    %c0_i32_0 = arith.constant 0 : i32
    %c0_i32_1 = arith.constant 0 : i32
    return %c0_i32, %c0_i32_0 : i32, i32
  }
  func.func @transform_4(%arg0: i32) -> (i32, i32) {
    %c0_i32 = arith.constant 0 : i32
    %c0_i32_0 = arith.constant 0 : i32
    %c0_i32_1 = arith.constant 0 : i32
    return %c0_i32, %c0_i32_0 : i32, i32
  }
  func.func @transform_5(%arg0: i32) -> (i32, i32) {
    %c0_i32 = arith.constant 0 : i32
    %c0_i32_0 = arith.constant 0 : i32
    %c0_i32_1 = arith.constant 0 : i32
    return %c0_i32, %c0_i32_0 : i32, i32
  }
  func.func @transform_6(%arg0: i32) -> (i32, i32) {
    %c0_i32 = arith.constant 0 : i32
    %c0_i32_0 = arith.constant 0 : i32
    %c0_i32_1 = arith.constant 0 : i32
    return %c0_i32, %c0_i32_0 : i32, i32
  }
  func.func @transform_7(%arg0: i32) -> (i32, i32) {
    %c0_i32 = arith.constant 0 : i32
    %c0_i32_0 = arith.constant 0 : i32
    return %arg0, %c0_i32 : i32, i32
  }
}

</mosaic_0001>

<llo_original>
// kernel: tpu_custom_call.1
$region0: #{tpu_custom_call.1}
  #allocation0 [shape = 'u32[]', space=smem, size = 0x4, offset = 0x4, fixed_abs, tag = 'smem constant byte address 0x4 - core index']
  #allocation1 [shape = 'u32[72,128]{1,0:T(1,128)}', space=vmem, size = 0x9000, scoped, tag = 'internal scratch']
  %s0 = inlined_call_operand.vmem [shape: f32[8,16], index: 0, kind: input, shape index: {}]
  %s1 = inlined_call_operand.vmem [shape: f32[16,128], index: 1, kind: input, shape index: {}]
  %s2 = inlined_call_operand.vmem [shape: f32[1,128], index: 2, kind: input, shape index: {}]
  %s3 = inlined_call_operand.vmem [shape: f32[128,128], index: 3, kind: input, shape index: {}]
  %s4 = inlined_call_operand.vmem [shape: f32[1,128], index: 4, kind: input, shape index: {}]
  %s5 = inlined_call_operand.vmem [shape: f32[128,64], index: 5, kind: input, shape index: {}]
  %s6 = inlined_call_operand.vmem [shape: f32[1,64], index: 6, kind: input, shape index: {}]
  %s7 = inlined_call_operand.hbm [shape: f32[8,64], index: 7, kind: output, shape index: {}]
  %s8 = sld [smem:[#allocation0]]
  $region38: #{tpu_custom_call.1} parent=0
    _
  %s10 = ssub.s32 1, %s8
  %s11 = scalar_select 0, %s10, %s8
  $region1: #{tpu_custom_call.1} parent=0
    #allocation2 [shape = 'u8[4096]{0}', space=vmem, size = 0x1000, scoped, tag = 'output window, operand 0, single buffered']
    #allocation3 [shape = 's32[1]{0}', space=sflag, size = 0x4, scoped, tag = 'scoped memory for tpu_custom_call.1']
    %12 = vsyncpa [#allocation3], 0
    // Predicated region
    $region2: #{tpu_custom_call.1} parent=1 // pred_check
      _
    $region3: #{tpu_custom_call.1} parent=1 // pred_check_branch
      %14 = sbr.rel (0) target = $region5
    $region4: #{tpu_custom_call.1} parent=1 // pred_region
      _
    $region5: #{tpu_custom_call.1} parent=1 // pred_fallthru
      _
    // Predicated region
    $region6: #{tpu_custom_call.1} parent=1 // pred_check
      _
    $region7: #{tpu_custom_call.1} parent=1 // pred_check_branch
      %16 = sbr.rel (0) target = $region9
    $region8: #{tpu_custom_call.1} parent=1 // pred_region
      _
    $region9: #{tpu_custom_call.1} parent=1 // pred_fallthru
      _
    // Predicated region
    $region10: #{tpu_custom_call.1} parent=1 // pred_check
      _
    $region11: #{tpu_custom_call.1} parent=1 // pred_check_branch
      %18 = sbr.rel (0) target = $region13
    $region12: #{tpu_custom_call.1} parent=1 // pred_region
      _
    $region13: #{tpu_custom_call.1} parent=1 // pred_fallthru
      _
    // Predicated region
    $region14: #{tpu_custom_call.1} parent=1 // pred_check
      _
    $region15: #{tpu_custom_call.1} parent=1 // pred_check_branch
      %20 = sbr.rel (0) target = $region17
    $region16: #{tpu_custom_call.1} parent=1 // pred_region
      _
    $region17: #{tpu_custom_call.1} parent=1 // pred_fallthru
      _
    // Predicated region
    $region18: #{tpu_custom_call.1} parent=1 // pred_check
      _
    $region19: #{tpu_custom_call.1} parent=1 // pred_check_branch
      %22 = sbr.rel (0) target = $region21
    $region20: #{tpu_custom_call.1} parent=1 // pred_region
      _
    $region21: #{tpu_custom_call.1} parent=1 // pred_fallthru
      _
    // Predicated region
    $region22: #{tpu_custom_call.1} parent=1 // pred_check
      _
    $region23: #{tpu_custom_call.1} parent=1 // pred_check_branch
      %24 = sbr.rel (0) target = $region25
    $region24: #{tpu_custom_call.1} parent=1 // pred_region
      _
    $region25: #{tpu_custom_call.1} parent=1 // pred_fallthru
      _
    // Predicated region
    $region26: #{tpu_custom_call.1} parent=1 // pred_check
      _
    $region27: #{tpu_custom_call.1} parent=1 // pred_check_branch
      %26 = sbr.rel (0) target = $region29
    $region28: #{tpu_custom_call.1} parent=1 // pred_region
      _
    $region29: #{tpu_custom_call.1} parent=1 // pred_fallthru
      _
    %v27 = vld [vmem:[%s0] sm:$0xff]
    %v28 = vld [vmem:[%s1] sm:$0xff]
    %v29 = vld [vmem:[%s1 + $0x8] sm:$0xff]
    %v30 = vld [vmem:[%s2] sm:$0x1]
    %v32 = vperm.slane %v30, 0
    %vm34 = vcmask 130048
    %v36 = vsel %vm34, %v27, 0
    %38 = vmatpush.msra.mxu0 0.0
    %39 = vmatpush.msra.mxu0 0.0
    %40 = vmatpush.msra.mxu0 0.0
    %41 = vmatpush.msra.mxu0 0.0
    %42 = vmatpush.msra.mxu0 0.0
    %43 = vmatpush.msra.mxu0 0.0
    %44 = vmatpush.msra.mxu0 0.0
    %45 = vmatpush.msra.mxu0 0.0
    %46 = vmatpush.msra.mxu0 0.0
    %47 = vmatpush.msra.mxu0 0.0
    %48 = vmatpush.msra.mxu0 0.0
    %49 = vmatpush.msra.mxu0 0.0
    %50 = vmatpush.msra.mxu0 0.0
    %51 = vmatpush.msra.mxu0 0.0
    %52 = vmatpush.msra.mxu0 %v29
    %53 = vmatpush.msra.mxu0 %v28
    %54 = vmatmul.f32.gmra.mxu0 %v36
    %v55 = vpop.f32.mrf.mxu0
    %v56 = vadd.f32 %v32, %v55
    %57 = vdwg.mxu0
    %v58 = vmax.f32 %v56, 0.0
    %v59 = vld [vmem:[%s3] sm:$0xff]
    %v60 = vld [vmem:[%s3 + $0x8] sm:$0xff]
    %v61 = vld [vmem:[%s3 + $0x10] sm:$0xff]
    %v62 = vld [vmem:[%s3 + $0x18] sm:$0xff]
    %v63 = vld [vmem:[%s3 + $0x20] sm:$0xff]
    %v64 = vld [vmem:[%s3 + $0x28] sm:$0xff]
    %v65 = vld [vmem:[%s3 + $0x30] sm:$0xff]
    %v66 = vld [vmem:[%s3 + $0x38] sm:$0xff]
    %v67 = vld [vmem:[%s3 + $0x40] sm:$0xff]
    %v68 = vld [vmem:[%s3 + $0x48] sm:$0xff]
    %v69 = vld [vmem:[%s3 + $0x50] sm:$0xff]
    %v70 = vld [vmem:[%s3 + $0x58] sm:$0xff]
    %v71 = vld [vmem:[%s3 + $0x60] sm:$0xff]
    %v72 = vld [vmem:[%s3 + $0x68] sm:$0xff]
    %v73 = vld [vmem:[%s3 + $0x70] sm:$0xff]
    %v74 = vld [vmem:[%s3 + $0x78] sm:$0xff]
    %v75 = vld [vmem:[%s4] sm:$0x1]
    %v77 = vperm.slane %v75, 0
    %79 = vmatpush.msra.mxu0 %v74
    %80 = vmatpush.msra.mxu0 %v73
    %81 = vmatpush.msra.mxu0 %v72
    %82 = vmatpush.msra.mxu0 %v71
    %83 = vmatpush.msra.mxu0 %v70
    %84 = vmatpush.msra.mxu0 %v69
    %85 = vmatpush.msra.mxu0 %v68
    %86 = vmatpush.msra.mxu0 %v67
    %87 = vmatpush.msra.mxu0 %v66
    %88 = vmatpush.msra.mxu0 %v65
    %89 = vmatpush.msra.mxu0 %v64
    %90 = vmatpush.msra.mxu0 %v63
    %91 = vmatpush.msra.mxu0 %v62
    %92 = vmatpush.msra.mxu0 %v61
    %93 = vmatpush.msra.mxu0 %v60
    %94 = vmatpush.msra.mxu0 %v59
    %95 = vmatmul.f32.gmra.mxu0 %v58
    %v96 = vpop.f32.mrf.mxu0
    %v97 = vadd.f32 %v77, %v96
    %98 = vdwg.mxu0
    %v99 = vmax.f32 %v97, 0.0
    %v100 = vld [vmem:[%s5] sm:$0xff]
    %v101 = vld [vmem:[%s5 + $0x8] sm:$0xff]
    %v102 = vld [vmem:[%s5 + $0x10] sm:$0xff]
    %v103 = vld [vmem:[%s5 + $0x18] sm:$0xff]
    %v104 = vld [vmem:[%s5 + $0x20] sm:$0xff]
    %v105 = vld [vmem:[%s5 + $0x28] sm:$0xff]
    %v106 = vld [vmem:[%s5 + $0x30] sm:$0xff]
    %v107 = vld [vmem:[%s5 + $0x38] sm:$0xff]
    %v108 = vld [vmem:[%s5 + $0x40] sm:$0xff]
    %v109 = vld [vmem:[%s5 + $0x48] sm:$0xff]
    %v110 = vld [vmem:[%s5 + $0x50] sm:$0xff]
    %v111 = vld [vmem:[%s5 + $0x58] sm:$0xff]
    %v112 = vld [vmem:[%s5 + $0x60] sm:$0xff]
    %v113 = vld [vmem:[%s5 + $0x68] sm:$0xff]
    %v114 = vld [vmem:[%s5 + $0x70] sm:$0xff]
    %v115 = vld [vmem:[%s5 + $0x78] sm:$0xff]
    %v116 = vld [vmem:[%s6] sm:$0x1]
    %v118 = vperm.slane %v116, 0
    %120 = vmatpush.msra.mxu0 %v115
    %121 = vmatpush.msra.mxu0 %v114
    %122 = vmatpush.msra.mxu0 %v113
    %123 = vmatpush.msra.mxu0 %v112
    %124 = vmatpush.msra.mxu0 %v111
    %125 = vmatpush.msra.mxu0 %v110
    %126 = vmatpush.msra.mxu0 %v109
    %127 = vmatpush.msra.mxu0 %v108
    %128 = vmatpush.msra.mxu0 %v107
    %129 = vmatpush.msra.mxu0 %v106
    %130 = vmatpush.msra.mxu0 %v105
    %131 = vmatpush.msra.mxu0 %v104
    %132 = vmatpush.msra.mxu0 %v103
    %133 = vmatpush.msra.mxu0 %v102
    %134 = vmatpush.msra.mxu0 %v101
    %135 = vmatpush.msra.mxu0 %v100
    %136 = vmatmul.f32.gmra.mxu0 %v99
    %v137 = vpop.f32.mrf.mxu0
    %v138 = vadd.f32 %v118, %v137
    %139 = vdwg.mxu0
    %v140 = vmax.f32 %v138, 0.0
    %vm141 = vcmask 523264
    %142 = vst.msk [vmem:[#allocation2] sm:$0xff] %vm141, %v140
    // Predicated region
    $region30: #{tpu_custom_call.1} parent=1 // pred_check
      _
    $region31: #{tpu_custom_call.1} parent=1 // pred_check_branch
      %144 = sbr.rel (0) target = $region33
    $region32: #{tpu_custom_call.1} parent=1 // pred_region
      %146 = vsyncadd [#allocation3], 0
      %s148 = sshll.u32 [#allocation2], 4
      %s149 = int_to_ptr.vmem [resolvable:$true] %s148
      %s150 = sshll.u32 %s7, 4
      %s151 = int_to_ptr.hbm [resolvable:$true] %s150
      %153 = dma.vmem_to_hbm [thread:$0]  %s149, 128, %s151, [#allocation3]
    $region33: #{tpu_custom_call.1} parent=1 // pred_fallthru
      _
    // Predicated region
    $region34: #{tpu_custom_call.1} parent=1 // pred_check
      _
    $region35: #{tpu_custom_call.1} parent=1 // pred_check_branch
      %155 = sbr.rel (0) target = $region37
    $region36: #{tpu_custom_call.1} parent=1 // pred_region
      %157 = dma.done [#allocation3], 128
    $region37: #{tpu_custom_call.1} parent=1 // pred_fallthru
      _
    %158 = vsyncpa [#allocation3], 1

</llo_original>
